<compile_context>
chip_gen: v7x
topology: tpu7x:2x2x1
jax: 0.10.0
libtpu: 0.0.40
codegen_flags: <defaults>
</compile_context>

<pallas_src>
import numpy as np
import jax
import jax.numpy as jnp
from jax import lax
from jax.experimental import pallas as pl
from jax.experimental.pallas import tpu as pltpu

_PTS_PER_ROW = 128                 # points per (rows, LANES) row
LANES = 3 * _PTS_PER_ROW           # 384 lanes: x0 y0 z0 x1 y1 z1 ...
_ROW_ALIGN = 8                     # sublane alignment for the row dim
MAX_TILE_ROWS = 1536               # 1536*384*4 B = 2.25 MiB per block
_TARGET_BLOCKS = 4                 # >=2 so both v7x TensorCores get work
_MIN_POINTS_FOR_PALLAS = 8192      # below this, plain XLA matmul wins

# static lane metadata: coordinate id (j mod 3) and point id (j // 3) per lane
_META_NP = np.stack([
    np.tile(np.arange(3, dtype=np.int32), _PTS_PER_ROW),
    np.repeat(np.arange(_PTS_PER_ROW, dtype=np.int32), 3),
])                                                            # (2, 384) int32


def _round_up(x, m):
    return (x + m - 1) // m * m


def _pick_tile_rows(rows):
    """Rows per grid block: multiple of 8, <= MAX_TILE_ROWS, targeting >=
    _TARGET_BLOCKS blocks (v7x has 2 TensorCores).  Prefers an exact divisor
    of `rows`; otherwise the (value-correct) ragged last block is accepted."""
    cand = min(MAX_TILE_ROWS,
               max(_ROW_ALIGN, _round_up(-(-rows // _TARGET_BLOCKS), _ROW_ALIGN)))
    cand = min(cand, rows)
    if rows % cand == 0:
        return cand
    t = cand - _ROW_ALIGN
    while t >= max(_ROW_ALIGN, cand // 2):
        if rows % t == 0:
            return t
        t -= _ROW_ALIGN
    return cand   # ragged trailing block: clamped rewrite is idempotent


# ----------------------------- Pallas kernel ------------------------------ #
def _rotate_kernel(meta_ref, coef_ref, x_ref, o_ref):
    """out = ptcloud @ R on a lane-interleaved (TILE_R, 384) slab.

    meta_ref : (2, 384) int32 VMEM   row 0: coord id (j mod 3), row 1: point id
    coef_ref : (3, 384) f32   VMEM   coef_ref[r, j] = R[r, j mod 3]
    x_ref    : (TILE_R, 384) f32 VMEM   flat [x0 y0 z0 x1 y1 z1 ...] slab
    o_ref    : (TILE_R, 384) f32 VMEM

    HBM-bandwidth bound (~0.75 flop/byte): the rotation is done with 4 XLU
    lane rotations plus ~13 VPU ops per element; no MXU, no relayouts.
    """
    v = x_ref[...]
    meta = meta_ref[...]
    cid = meta[0:1, :]          # (1, 384) coordinate id of each lane
    pid = meta[1:2, :]          # (1, 384) point id of each lane (within a row)
    coefs = coef_ref[...]

    def coef_for(c_ids):
        # per-lane coefficient R[c_ids[j], j mod 3]   (all (1, 384) planes)
        return jnp.where(c_ids == 0, coefs[0:1, :],
                         jnp.where(c_ids == 1, coefs[1:2, :], coefs[2:3, :]))

    # own-coordinate (diagonal) contribution: v[j] * R[c(j), c(j)]
    acc = v * coef_for(cid)

    # Neighbour contributions: lane rotations by +-1 / +-2 bring the other two
    # coordinates of the same point into every lane.  The coord / point ids are
    # rotated with the SAME op, so the math below is correct for either roll
    # sign convention, and lanes whose source wrapped to a different point are
    # explicitly selected away (jnp.where, not multiply-by-zero -> no 0*inf
    # cross-point leakage for non-finite inputs).
    for s in (1, 2, LANES - 1, LANES - 2):
        vs = pltpu.roll(v, s, axis=1)                 # big-tile XLU rotation
        ms = pltpu.roll(meta, s, axis=1)              # tiny (2, 384) rotation
        same_point = ms[1:2, :] == pid
        acc = acc + jnp.where(same_point, vs * coef_for(ms[0:1, :]), 0.0)

    o_ref[...] = acc


def _rotate_points_pallas(pts, R):
    """pts: (P, 3) f32, R: (3, 3) f32.  Returns pts @ R as (P, 3) f32."""
    P = pts.shape[0]
    rows = _round_up(-(-P // _PTS_PER_ROW), _ROW_ALIGN)
    tile_r = _pick_tile_rows(rows)
    total = rows * _PTS_PER_ROW

    flat = pts.reshape(-1)                             # free: (P,3) is contiguous
    if total != P:
        flat = jnp.pad(flat, [(0, 3 * (total - P))])   # only when N is unaligned
    x2d = flat.reshape(rows, LANES)                    # free lane-dense view

    coefs = jnp.tile(R.astype(jnp.float32), (1, _PTS_PER_ROW))   # (3, 384)
    meta = jnp.asarray(_META_NP)                                 # (2, 384)

    out2d = pl.pallas_call(
        _rotate_kernel,
        out_shape=jax.ShapeDtypeStruct((rows, LANES), jnp.float32),
        grid_spec=pltpu.PrefetchScalarGridSpec(
            num_scalar_prefetch=0,
            grid=(pl.cdiv(rows, tile_r),),
            in_specs=[
                pl.BlockSpec((2, LANES), lambda i: (0, 0)),       # lane metadata
                pl.BlockSpec((3, LANES), lambda i: (0, 0)),       # R coeff planes
                pl.BlockSpec((tile_r, LANES), lambda i: (i, 0)),  # point slab
            ],
            out_specs=pl.BlockSpec((tile_r, LANES), lambda i: (i, 0)),
        ),
        compiler_params=pltpu.CompilerParams(
            dimension_semantics=("parallel",),        # shards blocks across v7x TCs
            vmem_limit_bytes=32 * 1024 * 1024),       # covers v5e's 16 MiB default
    )(meta, coefs, x2d)

    out_flat = out2d.reshape(-1)                       # free
    if total != P:
        out_flat = out_flat[: 3 * P]
    return out_flat.reshape(P, 3)                      # free


def _rotate_points(pts, R):
    if pts.shape[0] < _MIN_POINTS_FOR_PALLAS:
        # Kernel-launch / grid overhead dwarfs the HBM time at tiny N.
        return jnp.matmul(pts, R, precision=lax.Precision.HIGHEST)
    return _rotate_points_pallas(pts, R)


# ------------------------- rotation-matrix helpers ------------------------- #
def _rot_x(angle):
    c, s = jnp.cos(angle), jnp.sin(angle)
    one, zero = jnp.ones_like(c), jnp.zeros_like(c)
    return jnp.stack([jnp.stack([one, zero, zero]),
                      jnp.stack([zero, c, -s]),
                      jnp.stack([zero, s, c])]).astype(jnp.float32)


def _rot_y(angle):
    c, s = jnp.cos(angle), jnp.sin(angle)
    one, zero = jnp.ones_like(c), jnp.zeros_like(c)
    return jnp.stack([jnp.stack([c, zero, s]),
                      jnp.stack([zero, one, zero]),
                      jnp.stack([-s, zero, c])]).astype(jnp.float32)


def _rot_z(angle):
    c, s = jnp.cos(angle), jnp.sin(angle)
    one, zero = jnp.ones_like(c), jnp.zeros_like(c)
    return jnp.stack([jnp.stack([c, -s, zero]),
                      jnp.stack([s, c, zero]),
                      jnp.stack([zero, zero, one])]).astype(jnp.float32)


# ------------------------------- module port ------------------------------- #
def rotate_point_cloud(ptcloud, key,
                       max_angle=2 * np.pi, upaxis='x',
                       prob=0.95, has_normal=False):
    """JAX/Pallas port of rotate_point_cloud.forward.

    ptcloud: (N, 3) float32 (or (N, 6) with has_normal=True).
    key:     explicit jax.random key replacing torch's global RNG.
    """
    if has_normal and ptcloud.shape[1] != 6:
        raise ValueError("has_normal=True expects an (N, 6) point cloud")

    k_gate, k_angle = jax.random.split(key)
    do_rotate = jax.random.uniform(k_gate, ()) < prob
    angle = jax.random.uniform(k_angle, ()) * max_angle

    if upaxis == 'x':
        R = _rot_x(angle)
    elif upaxis == 'y':
        R = _rot_y(angle)
    elif upaxis == 'z':
        R = _rot_z(angle)
    else:
        raise ValueError('unkown axis!')

    if ptcloud.dtype != jnp.float32:
        ptcloud = ptcloud.astype(jnp.float32)

    def _apply(pc):
        if has_normal:
            # (N, 6) -> (2N, 3) is a FREE view of the same interleaved buffer:
            # rotating every consecutive 3-vector rotates xyz and normals alike
            # (no concatenate / re-pack passes).
            return _rotate_points(pc.reshape(-1, 3), R).reshape(pc.shape[0], 6)
        xyz = pc if pc.shape[1] == 3 else pc[:, :3]
        return _rotate_points(xyz, R)

    def _passthrough(pc):
        # Exact pass-through (preserves -0.0 / inf bits), matching the PyTorch
        # "no rotation" branch.  (Shapes of both cond branches must match, so
        # extra columns are dropped like the rotate branch does.)
        return pc if has_normal else (pc if pc.shape[1] == 3 else pc[:, :3])

    return lax.cond(do_rotate, _apply, _passthrough, ptcloud)


# ---------------------------------- main ----------------------------------- #
if __name__ == "__main__":
    root = jax.random.PRNGKey(0)
    k_data, k_small, k_norm, k_mod = jax.random.split(root, 4)

    # --- direct kernel checks vs. a host-side float64 reference ------------ #
    R_test = _rot_z(jnp.float32(0.7371))
    R_np = np.asarray(R_test, dtype=np.float64)

    for n in (8192, 10000):            # aligned + ragged Pallas paths
        pts = jax.random.normal(k_data, (n, 3), dtype=jnp.float32)
        got = jax.block_until_ready(_rotate_points(pts, R_test))
        ref = np.asarray(pts, dtype=np.float64) @ R_np
        np.testing.assert_allclose(np.asarray(got), ref, rtol=1e-5, atol=1e-5)

    small = jax.random.normal(k_small, (500, 3), dtype=jnp.float32)   # XLA fallback
    got = jax.block_until_ready(_rotate_points(small, R_test))
    np.testing.assert_allclose(np.asarray(got),
                               np.asarray(small, dtype=np.float64) @ R_np,
                               rtol=1e-5, atol=1e-5)

    # --- full module semantics: xyz only ------------------------------------ #
    N = 10000
    ptcloud = jax.random.normal(k_data, (N, 3), dtype=jnp.float32)
    out = jax.block_until_ready(rotate_point_cloud(ptcloud, k_mod))

    k_gate, k_angle = jax.random.split(k_mod)
    do_rot = bool(jax.random.uniform(k_gate, ()) < 0.95)
    ang = jax.random.uniform(k_angle, ()) * (2 * np.pi)
    pc_np = np.asarray(ptcloud, dtype=np.float64)
    ref = pc_np @ np.asarray(_rot_x(ang), dtype=np.float64) if do_rot else pc_np
    assert out.shape == (N, 3) and out.dtype == jnp.float32
    np.testing.assert_allclose(np.asarray(out), ref, rtol=1e-5, atol=1e-5)

    # --- full module semantics: xyz + normals -------------------------------- #
    pcn = jax.random.normal(k_norm, (6000, 6), dtype=jnp.float32)
    outn = jax.block_until_ready(
        rotate_point_cloud(pcn, k_mod, upaxis='y', has_normal=True))
    Rn = np.asarray(_rot_y(ang), dtype=np.float64)
    pcn_np = np.asarray(pcn, dtype=np.float64)
    refn = (np.concatenate([pcn_np[:, :3] @ Rn, pcn_np[:, 3:] @ Rn], axis=1)
            if do_rot else pcn_np)
    assert outn.shape == (6000, 6) and outn.dtype == jnp.float32
    np.testing.assert_allclose(np.asarray(outn), refn, rtol=1e-5, atol=1e-5)

    print("KERNEL_OK")
</pallas_src>

<mosaic_0001>
module attributes {stable_mosaic.version = 11 : i64} {
  func.func @_rotate_kernel(%arg0: i32, %arg1: memref<2x384xi32, #tpu.memory_space<vmem>>, %arg2: memref<3x384xf32, #tpu.memory_space<vmem>>, %arg3: memref<16x384xf32, #tpu.memory_space<vmem>>, %arg4: memref<16x384xf32, #tpu.memory_space<vmem>>) attributes {dimension_semantics = [#tpu.dimension_semantics<parallel>], iteration_bounds = array<i64: 4>, scalar_prefetch = 0 : i64, scratch_operands = 0 : i64, tpu.core_type = #tpu.core_type<tc>, window_params = [{pipeline_mode = #tpu.pipeline_mode<synchronous>, transform_indices = @transform_0, window_bounds = array<i64: 2, 384>}, {pipeline_mode = #tpu.pipeline_mode<synchronous>, transform_indices = @transform_1, window_bounds = array<i64: 3, 384>}, {transform_indices = @transform_2, window_bounds = array<i64: 16, 384>}, {transform_indices = @transform_3, window_bounds = array<i64: 16, 384>}]} {
    %c0 = arith.constant 0 : index
    %c0_0 = arith.constant 0 : index
    %0 = vector.load %arg3[%c0, %c0_0] : memref<16x384xf32, #tpu.memory_space<vmem>>, vector<16x384xf32>
    %c0_1 = arith.constant 0 : index
    %c0_2 = arith.constant 0 : index
    %1 = vector.load %arg1[%c0_1, %c0_2] : memref<2x384xi32, #tpu.memory_space<vmem>>, vector<2x384xi32>
    %2 = vector.extract_strided_slice %1 {offsets = [0, 0], sizes = [1, 384], strides = [1, 1]} : vector<2x384xi32> to vector<1x384xi32>
    %3 = vector.extract_strided_slice %1 {offsets = [1, 0], sizes = [1, 384], strides = [1, 1]} : vector<2x384xi32> to vector<1x384xi32>
    %c0_3 = arith.constant 0 : index
    %c0_4 = arith.constant 0 : index
    %4 = vector.load %arg2[%c0_3, %c0_4] : memref<3x384xf32, #tpu.memory_space<vmem>>, vector<3x384xf32>
    %c0_i32 = arith.constant 0 : i32
    %5 = vector.broadcast %c0_i32 : i32 to vector<1x384xi32>
    %6 = arith.cmpi eq, %2, %5 : vector<1x384xi32>
    %7 = vector.extract_strided_slice %4 {offsets = [0, 0], sizes = [1, 384], strides = [1, 1]} : vector<3x384xf32> to vector<1x384xf32>
    %c1_i32 = arith.constant 1 : i32
    %8 = vector.broadcast %c1_i32 : i32 to vector<1x384xi32>
    %9 = arith.cmpi eq, %2, %8 : vector<1x384xi32>
    %10 = vector.extract_strided_slice %4 {offsets = [1, 0], sizes = [1, 384], strides = [1, 1]} : vector<3x384xf32> to vector<1x384xf32>
    %11 = vector.extract_strided_slice %4 {offsets = [2, 0], sizes = [1, 384], strides = [1, 1]} : vector<3x384xf32> to vector<1x384xf32>
    %12 = arith.select %9, %10, %11 : vector<1x384xi1>, vector<1x384xf32>
    %13 = arith.select %6, %7, %12 : vector<1x384xi1>, vector<1x384xf32>
    %14 = vector.broadcast %13 : vector<1x384xf32> to vector<16x384xf32>
    %15 = arith.mulf %0, %14 : vector<16x384xf32>
    %c1_i32_5 = arith.constant 1 : i32
    %16 = tpu.dynamic_rotate %0 by %c1_i32_5 dim 1 : vector<16x384xf32>, i32 -> vector<16x384xf32>
    %c1_i32_6 = arith.constant 1 : i32
    %17 = tpu.dynamic_rotate %1 by %c1_i32_6 dim 1 : vector<2x384xi32>, i32 -> vector<2x384xi32>
    %18 = vector.extract_strided_slice %17 {offsets = [1, 0], sizes = [1, 384], strides = [1, 1]} : vector<2x384xi32> to vector<1x384xi32>
    %19 = arith.cmpi eq, %18, %3 : vector<1x384xi32>
    %20 = vector.extract_strided_slice %17 {offsets = [0, 0], sizes = [1, 384], strides = [1, 1]} : vector<2x384xi32> to vector<1x384xi32>
    %c0_i32_7 = arith.constant 0 : i32
    %21 = vector.broadcast %c0_i32_7 : i32 to vector<1x384xi32>
    %22 = arith.cmpi eq, %20, %21 : vector<1x384xi32>
    %23 = vector.extract_strided_slice %4 {offsets = [0, 0], sizes = [1, 384], strides = [1, 1]} : vector<3x384xf32> to vector<1x384xf32>
    %c1_i32_8 = arith.constant 1 : i32
    %24 = vector.broadcast %c1_i32_8 : i32 to vector<1x384xi32>
    %25 = arith.cmpi eq, %20, %24 : vector<1x384xi32>
    %26 = vector.extract_strided_slice %4 {offsets = [1, 0], sizes = [1, 384], strides = [1, 1]} : vector<3x384xf32> to vector<1x384xf32>
    %27 = vector.extract_strided_slice %4 {offsets = [2, 0], sizes = [1, 384], strides = [1, 1]} : vector<3x384xf32> to vector<1x384xf32>
    %28 = arith.select %25, %26, %27 : vector<1x384xi1>, vector<1x384xf32>
    %29 = arith.select %22, %23, %28 : vector<1x384xi1>, vector<1x384xf32>
    %30 = vector.broadcast %29 : vector<1x384xf32> to vector<16x384xf32>
    %31 = arith.mulf %16, %30 : vector<16x384xf32>
    %cst = arith.constant 0.000000e+00 : f32
    %32 = vector.shape_cast %19 : vector<1x384xi1> to vector<1x384xi1>
    %33 = vector.broadcast %32 : vector<1x384xi1> to vector<16x384xi1>
    %34 = vector.broadcast %cst : f32 to vector<16x384xf32>
    %35 = arith.select %33, %31, %34 : vector<16x384xi1>, vector<16x384xf32>
    %36 = arith.addf %15, %35 : vector<16x384xf32>
    %c2_i32 = arith.constant 2 : i32
    %37 = tpu.dynamic_rotate %0 by %c2_i32 dim 1 : vector<16x384xf32>, i32 -> vector<16x384xf32>
    %c2_i32_9 = arith.constant 2 : i32
    %38 = tpu.dynamic_rotate %1 by %c2_i32_9 dim 1 : vector<2x384xi32>, i32 -> vector<2x384xi32>
    %39 = vector.extract_strided_slice %38 {offsets = [1, 0], sizes = [1, 384], strides = [1, 1]} : vector<2x384xi32> to vector<1x384xi32>
    %40 = arith.cmpi eq, %39, %3 : vector<1x384xi32>
    %41 = vector.extract_strided_slice %38 {offsets = [0, 0], sizes = [1, 384], strides = [1, 1]} : vector<2x384xi32> to vector<1x384xi32>
    %c0_i32_10 = arith.constant 0 : i32
    %42 = vector.broadcast %c0_i32_10 : i32 to vector<1x384xi32>
    %43 = arith.cmpi eq, %41, %42 : vector<1x384xi32>
    %44 = vector.extract_strided_slice %4 {offsets = [0, 0], sizes = [1, 384], strides = [1, 1]} : vector<3x384xf32> to vector<1x384xf32>
    %c1_i32_11 = arith.constant 1 : i32
    %45 = vector.broadcast %c1_i32_11 : i32 to vector<1x384xi32>
    %46 = arith.cmpi eq, %41, %45 : vector<1x384xi32>
    %47 = vector.extract_strided_slice %4 {offsets = [1, 0], sizes = [1, 384], strides = [1, 1]} : vector<3x384xf32> to vector<1x384xf32>
    %48 = vector.extract_strided_slice %4 {offsets = [2, 0], sizes = [1, 384], strides = [1, 1]} : vector<3x384xf32> to vector<1x384xf32>
    %49 = arith.select %46, %47, %48 : vector<1x384xi1>, vector<1x384xf32>
    %50 = arith.select %43, %44, %49 : vector<1x384xi1>, vector<1x384xf32>
    %51 = vector.broadcast %50 : vector<1x384xf32> to vector<16x384xf32>
    %52 = arith.mulf %37, %51 : vector<16x384xf32>
    %cst_12 = arith.constant 0.000000e+00 : f32
    %53 = vector.shape_cast %40 : vector<1x384xi1> to vector<1x384xi1>
    %54 = vector.broadcast %53 : vector<1x384xi1> to vector<16x384xi1>
    %55 = vector.broadcast %cst_12 : f32 to vector<16x384xf32>
    %56 = arith.select %54, %52, %55 : vector<16x384xi1>, vector<16x384xf32>
    %57 = arith.addf %36, %56 : vector<16x384xf32>
    %c383_i32 = arith.constant 383 : i32
    %58 = tpu.dynamic_rotate %0 by %c383_i32 dim 1 : vector<16x384xf32>, i32 -> vector<16x384xf32>
    %c383_i32_13 = arith.constant 383 : i32
    %59 = tpu.dynamic_rotate %1 by %c383_i32_13 dim 1 : vector<2x384xi32>, i32 -> vector<2x384xi32>
    %60 = vector.extract_strided_slice %59 {offsets = [1, 0], sizes = [1, 384], strides = [1, 1]} : vector<2x384xi32> to vector<1x384xi32>
    %61 = arith.cmpi eq, %60, %3 : vector<1x384xi32>
    %62 = vector.extract_strided_slice %59 {offsets = [0, 0], sizes = [1, 384], strides = [1, 1]} : vector<2x384xi32> to vector<1x384xi32>
    %c0_i32_14 = arith.constant 0 : i32
    %63 = vector.broadcast %c0_i32_14 : i32 to vector<1x384xi32>
    %64 = arith.cmpi eq, %62, %63 : vector<1x384xi32>
    %65 = vector.extract_strided_slice %4 {offsets = [0, 0], sizes = [1, 384], strides = [1, 1]} : vector<3x384xf32> to vector<1x384xf32>
    %c1_i32_15 = arith.constant 1 : i32
    %66 = vector.broadcast %c1_i32_15 : i32 to vector<1x384xi32>
    %67 = arith.cmpi eq, %62, %66 : vector<1x384xi32>
    %68 = vector.extract_strided_slice %4 {offsets = [1, 0], sizes = [1, 384], strides = [1, 1]} : vector<3x384xf32> to vector<1x384xf32>
    %69 = vector.extract_strided_slice %4 {offsets = [2, 0], sizes = [1, 384], strides = [1, 1]} : vector<3x384xf32> to vector<1x384xf32>
    %70 = arith.select %67, %68, %69 : vector<1x384xi1>, vector<1x384xf32>
    %71 = arith.select %64, %65, %70 : vector<1x384xi1>, vector<1x384xf32>
    %72 = vector.broadcast %71 : vector<1x384xf32> to vector<16x384xf32>
    %73 = arith.mulf %58, %72 : vector<16x384xf32>
    %cst_16 = arith.constant 0.000000e+00 : f32
    %74 = vector.shape_cast %61 : vector<1x384xi1> to vector<1x384xi1>
    %75 = vector.broadcast %74 : vector<1x384xi1> to vector<16x384xi1>
    %76 = vector.broadcast %cst_16 : f32 to vector<16x384xf32>
    %77 = arith.select %75, %73, %76 : vector<16x384xi1>, vector<16x384xf32>
    %78 = arith.addf %57, %77 : vector<16x384xf32>
    %c382_i32 = arith.constant 382 : i32
    %79 = tpu.dynamic_rotate %0 by %c382_i32 dim 1 : vector<16x384xf32>, i32 -> vector<16x384xf32>
    %c382_i32_17 = arith.constant 382 : i32
    %80 = tpu.dynamic_rotate %1 by %c382_i32_17 dim 1 : vector<2x384xi32>, i32 -> vector<2x384xi32>
    %81 = vector.extract_strided_slice %80 {offsets = [1, 0], sizes = [1, 384], strides = [1, 1]} : vector<2x384xi32> to vector<1x384xi32>
    %82 = arith.cmpi eq, %81, %3 : vector<1x384xi32>
    %83 = vector.extract_strided_slice %80 {offsets = [0, 0], sizes = [1, 384], strides = [1, 1]} : vector<2x384xi32> to vector<1x384xi32>
    %c0_i32_18 = arith.constant 0 : i32
    %84 = vector.broadcast %c0_i32_18 : i32 to vector<1x384xi32>
    %85 = arith.cmpi eq, %83, %84 : vector<1x384xi32>
    %86 = vector.extract_strided_slice %4 {offsets = [0, 0], sizes = [1, 384], strides = [1, 1]} : vector<3x384xf32> to vector<1x384xf32>
    %c1_i32_19 = arith.constant 1 : i32
    %87 = vector.broadcast %c1_i32_19 : i32 to vector<1x384xi32>
    %88 = arith.cmpi eq, %83, %87 : vector<1x384xi32>
    %89 = vector.extract_strided_slice %4 {offsets = [1, 0], sizes = [1, 384], strides = [1, 1]} : vector<3x384xf32> to vector<1x384xf32>
    %90 = vector.extract_strided_slice %4 {offsets = [2, 0], sizes = [1, 384], strides = [1, 1]} : vector<3x384xf32> to vector<1x384xf32>
    %91 = arith.select %88, %89, %90 : vector<1x384xi1>, vector<1x384xf32>
    %92 = arith.select %85, %86, %91 : vector<1x384xi1>, vector<1x384xf32>
    %93 = vector.broadcast %92 : vector<1x384xf32> to vector<16x384xf32>
    %94 = arith.mulf %79, %93 : vector<16x384xf32>
    %cst_20 = arith.constant 0.000000e+00 : f32
    %95 = vector.shape_cast %82 : vector<1x384xi1> to vector<1x384xi1>
    %96 = vector.broadcast %95 : vector<1x384xi1> to vector<16x384xi1>
    %97 = vector.broadcast %cst_20 : f32 to vector<16x384xf32>
    %98 = arith.select %96, %94, %97 : vector<16x384xi1>, vector<16x384xf32>
    %99 = arith.addf %78, %98 : vector<16x384xf32>
    %c0_21 = arith.constant 0 : index
    %c0_22 = arith.constant 0 : index
    %100 = vector.load %arg4[%c0_21, %c0_22] : memref<16x384xf32, #tpu.memory_space<vmem>>, vector<16x384xf32>
    tpu.vector_store %arg4[%c0_21, %c0_22], %99 {strides = array<i32>} : memref<16x384xf32, #tpu.memory_space<vmem>>, vector<16x384xf32>,
    return
  }
  func.func @transform_0(%arg0: i32) -> (i32, i32) {
    %c0_i32 = arith.constant 0 : i32
    %c0_i32_0 = arith.constant 0 : i32
    %c0_i32_1 = arith.constant 0 : i32
    return %c0_i32, %c0_i32_0 : i32, i32
  }
  func.func @transform_1(%arg0: i32) -> (i32, i32) {
    %c0_i32 = arith.constant 0 : i32
    %c0_i32_0 = arith.constant 0 : i32
    %c0_i32_1 = arith.constant 0 : i32
    return %c0_i32, %c0_i32_0 : i32, i32
  }
  func.func @transform_2(%arg0: i32) -> (i32, i32) {
    %c0_i32 = arith.constant 0 : i32
    %c0_i32_0 = arith.constant 0 : i32
    return %arg0, %c0_i32 : i32, i32
  }
  func.func @transform_3(%arg0: i32) -> (i32, i32) {
    %c0_i32 = arith.constant 0 : i32
    %c0_i32_0 = arith.constant 0 : i32
    return %arg0, %c0_i32 : i32, i32
  }
}

</mosaic_0001>

<llo_original>
// kernel: tpu_custom_call.1
$region0: #{tpu_custom_call.1}
  #allocation0 [shape = 'u32[]', space=smem, size = 0x4, offset = 0x4, fixed_abs, tag = 'smem constant byte address 0x4 - core index']
  #allocation1 [shape = 'u32[144,128]{1,0:T(1,128)}', space=vmem, size = 0x12000, scoped, tag = 'internal scratch']
  %s0 = inlined_call_operand.hbm [shape: s32[2,384], index: 0, kind: input, shape index: {}]
  %s1 = inlined_call_operand.hbm [shape: f32[3,384], index: 1, kind: input, shape index: {}]
  %s2 = inlined_call_operand.hbm [shape: f32[64,384], index: 2, kind: input, shape index: {}]
  %s3 = inlined_call_operand.hbm [shape: f32[64,384], index: 3, kind: output, shape index: {}]
  %s4 = sld [smem:[#allocation0]]
  $region57: #{tpu_custom_call.1} parent=0
    _
  %s6 = ssub.s32 1, %s4
  %s7 = scalar_select 0, %s6, %s4
  $region1: #{tpu_custom_call.1} parent=0
    #allocation2 [shape = 'u8[3072]{0}', space=vmem, size = 0xc00, scoped, tag = 'input window, operand 0, single buffered']
    #allocation3 [shape = 's32[2]{0}', space=sflag, size = 0x8, scoped, tag = 'scoped memory for tpu_custom_call.1']
    #allocation4 [shape = 's32[2]{0}', space=sflag, size = 0x8, scoped, tag = 'scoped memory for tpu_custom_call.1']
    #allocation5 [shape = 'u8[6144]{0}', space=vmem, size = 0x1800, scoped, tag = 'input window, operand 1, single buffered']
    #allocation6 [shape = 's32[1]{0}', space=sflag, size = 0x4, scoped, tag = 'scoped memory for tpu_custom_call.1']
    #allocation7 [shape = 'u8[49152]{0}', space=vmem, size = 0xc000, scoped, tag = 'input window, operand 2']
    #allocation8 [shape = 'u8[49152]{0}', space=vmem, size = 0xc000, scoped, tag = 'output window, operand 0']
    %8 = vsyncpa [#allocation3], 0
    %9 = vsyncpa [#allocation6], 0
    %10 = vsyncpa [#allocation4], 0
    %s11 = scalar_lea.sflag [#allocation4], 1
    %12 = vsyncpa %s11, 0
    loop: start=0, step=1, limit=6
    $region2: #{tpu_custom_call.1} parent=1 // loop_pre_header
      _
    $region3: #{tpu_custom_call.1} parent=1 // loop_header
      %s14 = sphi 0, %s18
      %p15 = scmp.ge.s32.totalorder %s14, 6
      %s22 = sphi 0, %s22
      %s24 = sphi 0, %s22
      %s25 = sphi 0, %s24
      %s39 = sphi 0, %s25
      %s43 = sphi 0, %s43
      %s45 = sphi 0, %s43
      %s46 = sphi 0, %s45
      %s60 = sphi 0, %s46
      %s66 = sphi 0, %s68
      %s69 = sphi 0, %s66
      %s70 = sphi 0, %s69
      %s86 = sphi 0, %s70
      %s92 = sphi 0, %s94
      %s95 = sphi 0, %s92
      %s96 = sphi 0, %s95
      %s112 = sphi 0, %s96
    $region4: #{tpu_custom_call.1} parent=1 // loop_header_branch
      %17 = sbr.rel (%p15) target = $region8
    $region5: #{tpu_custom_call.1} parent=1 // loop_body
      %s19 = ssub.s32 %s14, 1
      %s20 = ssub.s32 %s14, 2
      %s21 = sadd.s32 %s14, 1
      %s23 = sadd.s32 %s22, 1
      %p26 = scmp.eq.s32.totalorder %s14, 3
      %p27 = scmp.ne.s32.totalorder %s22, %s24
      %p28 = scmp.eq.s32.totalorder %s14, 0
      %p29 = por %p27, %p28
      %p30 = scmp.ne.s32.totalorder %s22, %s24
      %p31 = scmp.eq.s32.totalorder %s19, 3
      %p32 = por %p30, %p31
      %p33 = scmp.ne.s32.totalorder %s24, %s25
      %p34 = scmp.eq.s32.totalorder %s19, 0
      %p35 = por %p33, %p34
      %p36 = scmp.ne.s32.totalorder %s24, %s25
      %p37 = scmp.eq.s32.totalorder %s20, 3
      %p38 = por %p36, %p37
      %p40 = scmp.ne.s32.totalorder %s25, %s39
      %p41 = scmp.eq.s32.totalorder %s20, 0
      %p42 = por %p40, %p41
      %s44 = sadd.s32 %s43, 1
      %p47 = scmp.eq.s32.totalorder %s14, 3
      %p48 = scmp.ne.s32.totalorder %s43, %s45
      %p49 = scmp.eq.s32.totalorder %s14, 0
      %p50 = por %p48, %p49
      %p51 = scmp.ne.s32.totalorder %s43, %s45
      %p52 = scmp.eq.s32.totalorder %s19, 3
      %p53 = por %p51, %p52
      %p54 = scmp.ne.s32.totalorder %s45, %s46
      %p55 = scmp.eq.s32.totalorder %s19, 0
      %p56 = por %p54, %p55
      %p57 = scmp.ne.s32.totalorder %s45, %s46
      %p58 = scmp.eq.s32.totalorder %s20, 3
      %p59 = por %p57, %p58
      %p61 = scmp.ne.s32.totalorder %s46, %s60
      %p62 = scmp.eq.s32.totalorder %s20, 0
      %p63 = por %p61, %p62
      %s64 = ssub.s32 %s14, %s21
      %p65 = scmp.eq.s32.totalorder %s64, 0
      %s67 = sadd.s32 %s66, 1
      %s68 = scalar_select %p65, %s66, %s67
      %p71 = pneg %p65
      %p72 = scmp.eq.s32.totalorder %s14, 3
      %p73 = por %p71, %p72
      %p74 = scmp.ne.s32.totalorder %s66, %s69
      %p75 = scmp.eq.s32.totalorder %s14, 0
      %p76 = por %p74, %p75
      %p77 = scmp.ne.s32.totalorder %s66, %s69
      %p78 = scmp.eq.s32.totalorder %s19, 3
      %p79 = por %p77, %p78
      %p80 = scmp.ne.s32.totalorder %s69, %s70
      %p81 = scmp.eq.s32.totalorder %s19, 0
      %p82 = por %p80, %p81
      %p83 = scmp.ne.s32.totalorder %s69, %s70
      %p84 = scmp.eq.s32.totalorder %s20, 3
      %p85 = por %p83, %p84
      %p87 = scmp.ne.s32.totalorder %s70, %s86
      %p88 = scmp.eq.s32.totalorder %s20, 0
      %p89 = por %p87, %p88
      %s90 = ssub.s32 %s14, %s21
      %p91 = scmp.eq.s32.totalorder %s90, 0
      %s93 = sadd.s32 %s92, 1
      %s94 = scalar_select %p91, %s92, %s93
      %p97 = pneg %p91
      %p98 = scmp.eq.s32.totalorder %s14, 3
      %p99 = por %p97, %p98
      %p100 = scmp.ne.s32.totalorder %s92, %s95
      %p101 = scmp.eq.s32.totalorder %s14, 0
      %p102 = por %p100, %p101
      %p103 = scmp.ne.s32.totalorder %s92, %s95
      %p104 = scmp.eq.s32.totalorder %s19, 3
      %p105 = por %p103, %p104
      %p106 = scmp.ne.s32.totalorder %s95, %s96
      %p107 = scmp.eq.s32.totalorder %s19, 0
      %p108 = por %p106, %p107
      %p109 = scmp.ne.s32.totalorder %s95, %s96
      %p110 = scmp.eq.s32.totalorder %s20, 3
      %p111 = por %p109, %p110
      %p113 = scmp.ne.s32.totalorder %s96, %s112
      %p114 = scmp.eq.s32.totalorder %s20, 0
      %p115 = por %p113, %p114
      %p116 = scmp.le.s32.totalorder 1, %s14
      %p117 = scmp.lt.s32.totalorder %s14, 5
      %p118 = pnand %p116, %p117
      %p119 = pneg %p118
      // Predicated region
      $region9: #{tpu_custom_call.1} parent=5 // pred_check
        _
      $region10: #{tpu_custom_call.1} parent=5 // pred_check_branch
        %121 = sbr.rel (%p118) target = $region12
      $region11: #{tpu_custom_call.1} parent=5 // pred_region
        %s122 = ssub.s32 %s14, 1
        // Predicated region
        $region13: #{tpu_custom_call.1} parent=11 // pred_check
          %p123 = pneg %p35
        $region14: #{tpu_custom_call.1} parent=11 // pred_check_branch
          %125 = sbr.rel (%p123) target = $region16
        $region15: #{tpu_custom_call.1} parent=11 // pred_region
          %s127 = ssub.s32 96, 96
          %128 = vsyncadd [#allocation3], %s127
          %s130 = sshll.u32 [#allocation2], 4
          %s131 = int_to_ptr.vmem [resolvable:$true] %s130
          %133 = dma.hbm_to_vmem [thread:$0]  %s0, 96, %s131, [#allocation3]
        $region16: #{tpu_custom_call.1} parent=11 // pred_fallthru
          _
        // Predicated region
        $region17: #{tpu_custom_call.1} parent=11 // pred_check
          %p134 = pneg %p56
        $region18: #{tpu_custom_call.1} parent=11 // pred_check_branch
          %136 = sbr.rel (%p134) target = $region20
        $region19: #{tpu_custom_call.1} parent=11 // pred_region
          %s138 = ssub.s32 192, 192
          %139 = vsyncadd [#allocation6], %s138
          %s141 = sshll.u32 [#allocation5], 4
          %s142 = int_to_ptr.vmem [resolvable:$true] %s141
          %144 = dma.hbm_to_vmem [thread:$0]  %s1, 192, %s142, [#allocation6]
        $region20: #{tpu_custom_call.1} parent=11 // pred_fallthru
          _
      $region12: #{tpu_custom_call.1} parent=5 // pred_fallthru
        _
      %p145 = scmp.lt.s32.totalorder %s14, 4
      // Predicated region
      $region21: #{tpu_custom_call.1} parent=5 // pred_check
        %p146 = pneg %p145
      $region22: #{tpu_custom_call.1} parent=5 // pred_check_branch
        %148 = sbr.rel (%p146) target = $region24
      $region23: #{tpu_custom_call.1} parent=5 // pred_region
        // Predicated region
        $region25: #{tpu_custom_call.1} parent=23 // pred_check
          %p149 = pneg %p76
        $region26: #{tpu_custom_call.1} parent=23 // pred_check_branch
          %151 = sbr.rel (%p149) target = $region28
        $region27: #{tpu_custom_call.1} parent=23 // pred_region
          %s152 = sand.u32 %s14, 1
          %s153 = scalar_lea.sflag [#allocation3], %s152
          %s154 = sand.u32 %s66, 1
          %s155 = smul.addr %s154, 48
          %s156 = scalar_lea.vmem [#allocation7], %s155
          %s157 = smul.u32 2, %s14
          %s159 = ssub.s32 768, 768
          %160 = vsyncadd %s153, %s159
          %s161 = smul.addr %s157, 3
          %s162 = smul.addr %s161, 128
          %s163 = scalar_lea.hbm %s2, %s162
          %s164 = sshll.u32 %s156, 4
          %s165 = int_to_ptr.vmem [resolvable:$true] %s164
          %170 = dma.hbm_to_vmem [thread:$0]  %s163, 768, %s165, %s153, 384, 384, 24
        $region28: #{tpu_custom_call.1} parent=23 // pred_fallthru
          _
      $region24: #{tpu_custom_call.1} parent=5 // pred_fallthru
        _
      %p171 = scmp.le.s32.totalorder 1, %s14
      %p172 = scmp.lt.s32.totalorder %s14, 5
      %p173 = pnand %p171, %p172
      %p174 = pneg %p173
      // Predicated region
      $region29: #{tpu_custom_call.1} parent=5 // pred_check
        _
      $region30: #{tpu_custom_call.1} parent=5 // pred_check_branch
        %176 = sbr.rel (%p173) target = $region32
      $region31: #{tpu_custom_call.1} parent=5 // pred_region
        %s177 = ssub.s32 %s14, 1
        // Predicated region
        $region33: #{tpu_custom_call.1} parent=31 // pred_check
          %p178 = pneg %p35
        $region34: #{tpu_custom_call.1} parent=31 // pred_check_branch
          %180 = sbr.rel (%p178) target = $region36
        $region35: #{tpu_custom_call.1} parent=31 // pred_region
          %181 = dma.done [#allocation3], 96
        $region36: #{tpu_custom_call.1} parent=31 // pred_fallthru
          _
        // Predicated region
        $region37: #{tpu_custom_call.1} parent=31 // pred_check
          %p182 = pneg %p56
        $region38: #{tpu_custom_call.1} parent=31 // pred_check_branch
          %184 = sbr.rel (%p182) target = $region40
        $region39: #{tpu_custom_call.1} parent=31 // pred_region
          %185 = dma.done [#allocation6], 192
        $region40: #{tpu_custom_call.1} parent=31 // pred_fallthru
          _
        %s186 = sand.u32 %s19, 1
        %s187 = scalar_lea.sflag [#allocation3], %s186
        %s188 = sand.u32 %s69, 1
        %s189 = smul.addr %s188, 48
        %s190 = scalar_lea.vmem [#allocation7], %s189
        // Predicated region
        $region41: #{tpu_custom_call.1} parent=31 // pred_check
          %p191 = pneg %p82
        $region42: #{tpu_custom_call.1} parent=31 // pred_check_branch
          %193 = sbr.rel (%p191) target = $region44
        $region43: #{tpu_custom_call.1} parent=31 // pred_region
          %194 = dma.done %s187, 768
        $region44: #{tpu_custom_call.1} parent=31 // pred_fallthru
          _
        %p195 = pneg %p35
        %p196 = pneg %p32
        %p197 = pneg %p56
        %p198 = pneg %p53
        %s199 = sand.u32 %s19, 1
        %s200 = scalar_lea.sflag [#allocation3], %s199
        %s201 = sand.u32 %s69, 1
        %s202 = smul.addr %s201, 48
        %s203 = scalar_lea.vmem [#allocation7], %s202
        %p204 = pneg %p82
        %p205 = pneg %p79
        %p206 = pneg %p108
        %p207 = pneg %p105
        %s208 = sand.u32 %s95, 1
        %s209 = scalar_lea.sflag [#allocation4], %s208
        %s210 = sand.u32 %s95, 1
        %s211 = smul.addr %s210, 48
        %s212 = scalar_lea.vmem [#allocation8], %s211
        %s213 = smul.u32 2, %s19
        %s214 = smul.u32 2, %s19
        %v215 = vld [vmem:[%s190] sm:$0xff]
        %v216 = vld [vmem:[%s190 + $0x8] sm:$0xff]
        %v217 = vld [vmem:[%s190 + $0x10] sm:$0xff]
        %v218 = vld [vmem:[%s190 + $0x18] sm:$0xff]
        %v219 = vld [vmem:[%s190 + $0x20] sm:$0xff]
        %v220 = vld [vmem:[%s190 + $0x28] sm:$0xff]
        %v221 = vld [vmem:[#allocation2] sm:$0x3f]
        %v222 = vld [vmem:[#allocation5] sm:$0x77]
        %v223 = vld [vmem:[#allocation5 + $0x8] sm:$0x7]
        %vm224 = vcmp.eq.s32.totalorder %v221, 0
        %vm225 = vcmp.eq.s32.totalorder %v221, 1
        %v229 = vunpack.c.l.s4 1983009808
        %v230 = vunpack.c.0.s8 %v229
        %v231 = vlaneseq
        %v232 = vshrl.u32 %v231, 7
        %v233 = vsub.s32 %v230, %v232
        %v234 = vrot.slane %v222, %v233
        %v236 = vunpack.c.l.s4 1983009808
        %v237 = vunpack.c.0.s8 %v236
        %v238 = vlaneseq
        %v239 = vshrl.u32 %v238, 7
        %v240 = vsub.s32 %v237, %v239
        %v241 = vrot.slane %v223, %v240
        %v242 = vcombine.low %v234, %v241
        %v243 = vrot.slane %v242, 7
        %v244 = vrot.slane %v243, 2
        %v246 = vcombine.high %v234, %v241
        %v248 = vsel %vm225, %v244, %v246
        %v250 = vsel %vm224, %v242, %v248
        %v252 = vlaneseq
        %v253 = vshrl.u32 %v252, 7
        %v254 = vsub.s32 0, %v253
        %v255 = vrot.slane %v250, %v254
        %v256 = vlaneseq
        %v257 = vshrl.u32 %v256, 7
        %v258 = vsub.s32 2, %v257
        %v259 = vrot.slane %v250, %v258
        %v260 = vlaneseq
        %v261 = vshrl.u32 %v260, 7
        %v262 = vsub.s32 4, %v261
        %v263 = vrot.slane %v250, %v262
        %v267 = vlaneseq
        %v268 = vshrl.u32 %v267, 7
        %v269 = vsub.s32 0, %v268
        %v270 = vrot.slane %v255, %v269
        %v271 = vlaneseq
        %v272 = vshrl.u32 %v271, 7
        %v273 = vsub.s32 0, %v272
        %v274 = vrot.slane %v259, %v273
        %v275 = vlaneseq
        %v276 = vshrl.u32 %v275, 7
        %v277 = vsub.s32 0, %v276
        %v278 = vrot.slane %v263, %v277
        %v279 = vmul.f32 %v215, %v270
        %v280 = vmul.f32 %v216, %v274
        %v281 = vmul.f32 %v217, %v278
        %v282 = vmul.f32 %v218, %v270
        %v283 = vmul.f32 %v219, %v274
        %v284 = vmul.f32 %v220, %v278
        %285 = vrot.lane.b32.xlu0 %v215, 1
        %v286 = vpop.permute.xlu0 %285
        %287 = vrot.lane.b32.xlu0 %v218, 1
        %v288 = vpop.permute.xlu0 %287
        %289 = vrot.lane.b32.xlu0 %v216, 1
        %v290 = vpop.permute.xlu0 %289
        %291 = vrot.lane.b32.xlu0 %v219, 1
        %v292 = vpop.permute.xlu0 %291
        %293 = vrot.lane.b32.xlu0 %v217, 1
        %v294 = vpop.permute.xlu0 %293
        %295 = vrot.lane.b32.xlu0 %v220, 1
        %v296 = vpop.permute.xlu0 %295
        %v297 = vlaneseq
        %v298 = vand.u32 %v297, 127
        %vm299 = vcmp.lt.s32.totalorder %v298, 1
        %v300 = vsel %vm299, %v290, %v294
        %v301 = vsel %vm299, %v292, %v296
        %v302 = vsel %vm299, %v286, %v290
        %v303 = vsel %vm299, %v288, %v292
        %v304 = vsel %vm299, %v294, %v286
        %v305 = vsel %vm299, %v296, %v288
        %v306 = vcombine.high %v221, %v221
        %v308 = vunpack.c.l.s4 1983009808
        %v309 = vunpack.c.0.s8 %v308
        %v310 = vlaneseq
        %v311 = vshrl.u32 %v310, 7
        %v312 = vsub.s32 %v309, %v311
        %v313 = vrot.slane %v221, %v312
        %v315 = vunpack.c.l.s4 1983009808
        %v316 = vunpack.c.0.s8 %v315
        %v317 = vlaneseq
        %v318 = vshrl.u32 %v317, 7
        %v319 = vsub.s32 %v316, %v318
        %v320 = vrot.slane %v306, %v319
        %v321 = vcombine.high %v313, %v313
        %322 = vrot.lane.b32.xlu0 %v313, 1
        %v323 = vpop.permute.xlu0 %322
        %324 = vrot.lane.b32.xlu0 %v321, 1
        %v325 = vpop.permute.xlu0 %324
        %326 = vrot.lane.b32.xlu0 %v320, 1
        %v327 = vpop.permute.xlu0 %326
        %v328 = vsel %vm299, %v325, %v327
        %v329 = vsel %vm299, %v323, %v325
        %v330 = vsel %vm299, %v327, %v323
        %v331 = vlaneseq
        %v332 = vshrl.u32 %v331, 7
        %v333 = vsub.s32 1, %v332
        %v334 = vrot.slane %v221, %v333
        %v335 = vlaneseq
        %v336 = vshrl.u32 %v335, 7
        %v337 = vsub.s32 3, %v336
        %v338 = vrot.slane %v221, %v337
        %v339 = vlaneseq
        %v340 = vshrl.u32 %v339, 7
        %v341 = vsub.s32 5, %v340
        %v342 = vrot.slane %v221, %v341
        %vm343 = vcmp.eq.s32.totalorder %v330, %v334
        %vm344 = vcmp.eq.s32.totalorder %v329, %v338
        %vm345 = vcmp.eq.s32.totalorder %v328, %v342
        %vm346 = vcmp.eq.s32.totalorder %v330, 0
        %vm347 = vcmp.eq.s32.totalorder %v329, 0
        %vm348 = vcmp.eq.s32.totalorder %v328, 0
        %vm349 = vcmp.eq.s32.totalorder %v330, 1
        %vm350 = vcmp.eq.s32.totalorder %v329, 1
        %vm351 = vcmp.eq.s32.totalorder %v328, 1
        %v352 = vlaneseq
        %v353 = vshrl.u32 %v352, 7
        %v354 = vsub.s32 1, %v353
        %v355 = vrot.slane %v222, %v354
        %v356 = vlaneseq
        %v357 = vshrl.u32 %v356, 7
        %v358 = vsub.s32 5, %v357
        %v359 = vrot.slane %v222, %v358
        %v360 = vlaneseq
        %v361 = vshrl.u32 %v360, 7
        %v362 = vsub.s32 1, %v361
        %v363 = vrot.slane %v223, %v362
        %v367 = vlaneseq
        %v368 = vshrl.u32 %v367, 7
        %v369 = vsub.s32 2, %v368
        %v370 = vrot.slane %v222, %v369
        %v371 = vlaneseq
        %v372 = vshrl.u32 %v371, 7
        %v373 = vsub.s32 6, %v372
        %v374 = vrot.slane %v222, %v373
        %v375 = vlaneseq
        %v376 = vshrl.u32 %v375, 7
        %v377 = vsub.s32 2, %v376
        %v378 = vrot.slane %v223, %v377
        %v382 = vsel %vm349, %v355, %v370
        %v383 = vsel %vm350, %v359, %v374
        %v384 = vsel %vm351, %v363, %v378
        %v385 = vlaneseq
        %v386 = vshrl.u32 %v385, 7
        %v387 = vsub.s32 0, %v386
        %v388 = vrot.slane %v222, %v387
        %v389 = vlaneseq
        %v390 = vshrl.u32 %v389, 7
        %v391 = vsub.s32 4, %v390
        %v392 = vrot.slane %v222, %v391
        %v393 = vlaneseq
        %v394 = vshrl.u32 %v393, 7
        %v395 = vsub.s32 0, %v394
        %v396 = vrot.slane %v223, %v395
        %v400 = vsel %vm346, %v388, %v382
        %v401 = vsel %vm347, %v392, %v383
        %v402 = vsel %vm348, %v396, %v384
        %v403 = vlaneseq
        %v404 = vshrl.u32 %v403, 7
        %v405 = vsub.s32 0, %v404
        %v406 = vrot.slane %v400, %v405
        %v407 = vlaneseq
        %v408 = vshrl.u32 %v407, 7
        %v409 = vsub.s32 0, %v408
        %v410 = vrot.slane %v401, %v409
        %v411 = vlaneseq
        %v412 = vshrl.u32 %v411, 7
        %v413 = vsub.s32 0, %v412
        %v414 = vrot.slane %v402, %v413
        %v415 = vmul.f32 %v304, %v406
        %v416 = vmul.f32 %v302, %v410
        %v417 = vmul.f32 %v300, %v414
        %v418 = vmul.f32 %v305, %v406
        %v419 = vmul.f32 %v303, %v410
        %v420 = vmul.f32 %v301, %v414
        %v421 = vsel %vm343, 1, 0
        %v422 = vsel %vm344, 1, 0
        %v423 = vsel %vm345, 1, 0
        %v424 = vlaneseq
        %v425 = vshrl.u32 %v424, 7
        %v426 = vsub.s32 1, %v425
        %v427 = vrot.slane %v421, %v426
        %v428 = vlaneseq
        %v429 = vshrl.u32 %v428, 7
        %v430 = vsub.s32 1, %v429
        %v431 = vrot.slane %v422, %v430
        %v432 = vlaneseq
        %v433 = vshrl.u32 %v432, 7
        %v434 = vsub.s32 1, %v433
        %v435 = vrot.slane %v423, %v434
        %vm436 = vcmp.eq.s32.totalorder %v427, 1
        %vm437 = vcmp.eq.s32.totalorder %v431, 1
        %vm438 = vcmp.eq.s32.totalorder %v435, 1
        %v439 = vsel %vm436, %v415, 0.0
        %v440 = vsel %vm437, %v416, 0.0
        %v441 = vsel %vm438, %v417, 0.0
        %v442 = vsel %vm436, %v418, 0.0
        %v443 = vsel %vm437, %v419, 0.0
        %v444 = vsel %vm438, %v420, 0.0
        %v445 = vadd.f32 %v279, %v439
        %v446 = vadd.f32 %v280, %v440
        %v447 = vadd.f32 %v281, %v441
        %v448 = vadd.f32 %v282, %v442
        %v449 = vadd.f32 %v283, %v443
        %v450 = vadd.f32 %v284, %v444
        %451 = vrot.lane.b32.xlu0 %v215, 2
        %v452 = vpop.permute.xlu0 %451
        %453 = vrot.lane.b32.xlu0 %v218, 2
        %v454 = vpop.permute.xlu0 %453
        %455 = vrot.lane.b32.xlu0 %v216, 2
        %v456 = vpop.permute.xlu0 %455
        %457 = vrot.lane.b32.xlu0 %v219, 2
        %v458 = vpop.permute.xlu0 %457
        %459 = vrot.lane.b32.xlu0 %v217, 2
        %v460 = vpop.permute.xlu0 %459
        %461 = vrot.lane.b32.xlu0 %v220, 2
        %v462 = vpop.permute.xlu0 %461
        %vm463 = vcmp.lt.s32.totalorder %v298, 2
        %v464 = vsel %vm463, %v456, %v460
        %v465 = vsel %vm463, %v458, %v462
        %v466 = vsel %vm463, %v452, %v456
        %v467 = vsel %vm463, %v454, %v458
        %v468 = vsel %vm463, %v460, %v452
        %v469 = vsel %vm463, %v462, %v454
        %470 = vrot.lane.b32.xlu0 %v313, 2
        %v471 = vpop.permute.xlu0 %470
        %472 = vrot.lane.b32.xlu0 %v321, 2
        %v473 = vpop.permute.xlu0 %472
        %474 = vrot.lane.b32.xlu0 %v320, 2
        %v475 = vpop.permute.xlu0 %474
        %v476 = vsel %vm463, %v473, %v475
        %v477 = vsel %vm463, %v471, %v473
        %v478 = vsel %vm463, %v475, %v471
        %vm479 = vcmp.eq.s32.totalorder %v478, %v334
        %vm480 = vcmp.eq.s32.totalorder %v477, %v338
        %vm481 = vcmp.eq.s32.totalorder %v476, %v342
        %vm482 = vcmp.eq.s32.totalorder %v478, 0
        %vm483 = vcmp.eq.s32.totalorder %v477, 0
        %vm484 = vcmp.eq.s32.totalorder %v476, 0
        %vm485 = vcmp.eq.s32.totalorder %v478, 1
        %vm486 = vcmp.eq.s32.totalorder %v477, 1
        %vm487 = vcmp.eq.s32.totalorder %v476, 1
        %v488 = vsel %vm485, %v355, %v370
        %v489 = vsel %vm486, %v359, %v374
        %v490 = vsel %vm487, %v363, %v378
        %v491 = vsel %vm482, %v388, %v488
        %v492 = vsel %vm483, %v392, %v489
        %v493 = vsel %vm484, %v396, %v490
        %v494 = vlaneseq
        %v495 = vshrl.u32 %v494, 7
        %v496 = vsub.s32 0, %v495
        %v497 = vrot.slane %v491, %v496
        %v498 = vlaneseq
        %v499 = vshrl.u32 %v498, 7
        %v500 = vsub.s32 0, %v499
        %v501 = vrot.slane %v492, %v500
        %v502 = vlaneseq
        %v503 = vshrl.u32 %v502, 7
        %v504 = vsub.s32 0, %v503
        %v505 = vrot.slane %v493, %v504
        %v506 = vmul.f32 %v468, %v497
        %v507 = vmul.f32 %v466, %v501
        %v508 = vmul.f32 %v464, %v505
        %v509 = vmul.f32 %v469, %v497
        %v510 = vmul.f32 %v467, %v501
        %v511 = vmul.f32 %v465, %v505
        %v512 = vsel %vm479, 1, 0
        %v513 = vsel %vm480, 1, 0
        %v514 = vsel %vm481, 1, 0
        %v515 = vlaneseq
        %v516 = vshrl.u32 %v515, 7
        %v517 = vsub.s32 1, %v516
        %v518 = vrot.slane %v512, %v517
        %v519 = vlaneseq
        %v520 = vshrl.u32 %v519, 7
        %v521 = vsub.s32 1, %v520
        %v522 = vrot.slane %v513, %v521
        %v523 = vlaneseq
        %v524 = vshrl.u32 %v523, 7
        %v525 = vsub.s32 1, %v524
        %v526 = vrot.slane %v514, %v525
        %vm527 = vcmp.eq.s32.totalorder %v518, 1
        %vm528 = vcmp.eq.s32.totalorder %v522, 1
        %vm529 = vcmp.eq.s32.totalorder %v526, 1
        %v530 = vsel %vm527, %v506, 0.0
        %v531 = vsel %vm528, %v507, 0.0
        %v532 = vsel %vm529, %v508, 0.0
        %v533 = vsel %vm527, %v509, 0.0
        %v534 = vsel %vm528, %v510, 0.0
        %v535 = vsel %vm529, %v511, 0.0
        %v536 = vadd.f32 %v445, %v530
        %v537 = vadd.f32 %v446, %v531
        %v538 = vadd.f32 %v447, %v532
        %v539 = vadd.f32 %v448, %v533
        %v540 = vadd.f32 %v449, %v534
        %v541 = vadd.f32 %v450, %v535
        %542 = vrot.lane.b32.xlu0 %v215, 127
        %v543 = vpop.permute.xlu0 %542
        %544 = vrot.lane.b32.xlu0 %v218, 127
        %v545 = vpop.permute.xlu0 %544
        %546 = vrot.lane.b32.xlu0 %v216, 127
        %v547 = vpop.permute.xlu0 %546
        %548 = vrot.lane.b32.xlu0 %v219, 127
        %v549 = vpop.permute.xlu0 %548
        %550 = vrot.lane.b32.xlu0 %v217, 127
        %v551 = vpop.permute.xlu0 %550
        %552 = vrot.lane.b32.xlu0 %v220, 127
        %v553 = vpop.permute.xlu0 %552
        %vm554 = vcmp.lt.s32.totalorder %v298, 127
        %v555 = vsel %vm554, %v547, %v551
        %v556 = vsel %vm554, %v549, %v553
        %v557 = vsel %vm554, %v543, %v547
        %v558 = vsel %vm554, %v545, %v549
        %v559 = vsel %vm554, %v551, %v543
        %v560 = vsel %vm554, %v553, %v545
        %561 = vrot.lane.b32.xlu0 %v313, 127
        %v562 = vpop.permute.xlu0 %561
        %563 = vrot.lane.b32.xlu0 %v321, 127
        %v564 = vpop.permute.xlu0 %563
        %565 = vrot.lane.b32.xlu0 %v320, 127
        %v566 = vpop.permute.xlu0 %565
        %v567 = vsel %vm554, %v564, %v566
        %v568 = vsel %vm554, %v562, %v564
        %v569 = vsel %vm554, %v566, %v562
        %vm570 = vcmp.eq.s32.totalorder %v568, %v334
        %vm571 = vcmp.eq.s32.totalorder %v567, %v338
        %vm572 = vcmp.eq.s32.totalorder %v569, %v342
        %vm573 = vcmp.eq.s32.totalorder %v568, 0
        %vm574 = vcmp.eq.s32.totalorder %v567, 0
        %vm575 = vcmp.eq.s32.totalorder %v569, 0
        %vm576 = vcmp.eq.s32.totalorder %v568, 1
        %vm577 = vcmp.eq.s32.totalorder %v567, 1
        %vm578 = vcmp.eq.s32.totalorder %v569, 1
        %v579 = vsel %vm576, %v355, %v370
        %v580 = vsel %vm577, %v359, %v374
        %v581 = vsel %vm578, %v363, %v378
        %v582 = vsel %vm573, %v388, %v579
        %v583 = vsel %vm574, %v392, %v580
        %v584 = vsel %vm575, %v396, %v581
        %v585 = vlaneseq
        %v586 = vshrl.u32 %v585, 7
        %v587 = vsub.s32 0, %v586
        %v588 = vrot.slane %v582, %v587
        %v589 = vlaneseq
        %v590 = vshrl.u32 %v589, 7
        %v591 = vsub.s32 0, %v590
        %v592 = vrot.slane %v583, %v591
        %v593 = vlaneseq
        %v594 = vshrl.u32 %v593, 7
        %v595 = vsub.s32 0, %v594
        %v596 = vrot.slane %v584, %v595
        %v597 = vmul.f32 %v557, %v588
        %v598 = vmul.f32 %v555, %v592
        %v599 = vmul.f32 %v559, %v596
        %v600 = vmul.f32 %v558, %v588
        %v601 = vmul.f32 %v556, %v592
        %v602 = vmul.f32 %v560, %v596
        %v603 = vsel %vm570, 1, 0
        %v604 = vsel %vm571, 1, 0
        %v605 = vsel %vm572, 1, 0
        %v606 = vlaneseq
        %v607 = vshrl.u32 %v606, 7
        %v608 = vsub.s32 1, %v607
        %v609 = vrot.slane %v603, %v608
        %v610 = vlaneseq
        %v611 = vshrl.u32 %v610, 7
        %v612 = vsub.s32 1, %v611
        %v613 = vrot.slane %v604, %v612
        %v614 = vlaneseq
        %v615 = vshrl.u32 %v614, 7
        %v616 = vsub.s32 1, %v615
        %v617 = vrot.slane %v605, %v616
        %vm618 = vcmp.eq.s32.totalorder %v609, 1
        %vm619 = vcmp.eq.s32.totalorder %v613, 1
        %vm620 = vcmp.eq.s32.totalorder %v617, 1
        %v621 = vsel %vm618, %v597, 0.0
        %v622 = vsel %vm619, %v598, 0.0
        %v623 = vsel %vm620, %v599, 0.0
        %v624 = vsel %vm618, %v600, 0.0
        %v625 = vsel %vm619, %v601, 0.0
        %v626 = vsel %vm620, %v602, 0.0
        %v627 = vadd.f32 %v536, %v621
        %v628 = vadd.f32 %v537, %v622
        %v629 = vadd.f32 %v538, %v623
        %v630 = vadd.f32 %v539, %v624
        %v631 = vadd.f32 %v540, %v625
        %v632 = vadd.f32 %v541, %v626
        %633 = vrot.lane.b32.xlu0 %v215, 126
        %v634 = vpop.permute.xlu0 %633
        %635 = vrot.lane.b32.xlu0 %v218, 126
        %v636 = vpop.permute.xlu0 %635
        %637 = vrot.lane.b32.xlu0 %v216, 126
        %v638 = vpop.permute.xlu0 %637
        %639 = vrot.lane.b32.xlu0 %v219, 126
        %v640 = vpop.permute.xlu0 %639
        %641 = vrot.lane.b32.xlu0 %v217, 126
        %v642 = vpop.permute.xlu0 %641
        %643 = vrot.lane.b32.xlu0 %v220, 126
        %v644 = vpop.permute.xlu0 %643
        %vm645 = vcmp.lt.s32.totalorder %v298, 126
        %v646 = vsel %vm645, %v638, %v642
        %v647 = vsel %vm645, %v640, %v644
        %v648 = vsel %vm645, %v634, %v638
        %v649 = vsel %vm645, %v636, %v640
        %v650 = vsel %vm645, %v642, %v634
        %v651 = vsel %vm645, %v644, %v636
        %652 = vrot.lane.b32.xlu0 %v313, 126
        %v653 = vpop.permute.xlu0 %652
        %654 = vrot.lane.b32.xlu0 %v321, 126
        %v655 = vpop.permute.xlu0 %654
        %656 = vrot.lane.b32.xlu0 %v320, 126
        %v657 = vpop.permute.xlu0 %656
        %v658 = vsel %vm645, %v655, %v657
        %v659 = vsel %vm645, %v653, %v655
        %v660 = vsel %vm645, %v657, %v653
        %vm661 = vcmp.eq.s32.totalorder %v659, %v334
        %vm662 = vcmp.eq.s32.totalorder %v658, %v338
        %vm663 = vcmp.eq.s32.totalorder %v660, %v342
        %vm664 = vcmp.eq.s32.totalorder %v659, 0
        %vm665 = vcmp.eq.s32.totalorder %v658, 0
        %vm666 = vcmp.eq.s32.totalorder %v660, 0
        %vm667 = vcmp.eq.s32.totalorder %v659, 1
        %vm668 = vcmp.eq.s32.totalorder %v658, 1
        %vm669 = vcmp.eq.s32.totalorder %v660, 1
        %v670 = vsel %vm667, %v355, %v370
        %v671 = vsel %vm668, %v359, %v374
        %v672 = vsel %vm669, %v363, %v378
        %v673 = vsel %vm664, %v388, %v670
        %v674 = vsel %vm665, %v392, %v671
        %v675 = vsel %vm666, %v396, %v672
        %v676 = vlaneseq
        %v677 = vshrl.u32 %v676, 7
        %v678 = vsub.s32 0, %v677
        %v679 = vrot.slane %v673, %v678
        %v680 = vlaneseq
        %v681 = vshrl.u32 %v680, 7
        %v682 = vsub.s32 0, %v681
        %v683 = vrot.slane %v674, %v682
        %v684 = vlaneseq
        %v685 = vshrl.u32 %v684, 7
        %v686 = vsub.s32 0, %v685
        %v687 = vrot.slane %v675, %v686
        %v688 = vmul.f32 %v648, %v679
        %v689 = vmul.f32 %v646, %v683
        %v690 = vmul.f32 %v650, %v687
        %v691 = vmul.f32 %v649, %v679
        %v692 = vmul.f32 %v647, %v683
        %v693 = vmul.f32 %v651, %v687
        %v694 = vsel %vm661, 1, 0
        %v695 = vsel %vm662, 1, 0
        %v696 = vsel %vm663, 1, 0
        %v697 = vlaneseq
        %v698 = vshrl.u32 %v697, 7
        %v699 = vsub.s32 1, %v698
        %v700 = vrot.slane %v694, %v699
        %v701 = vlaneseq
        %v702 = vshrl.u32 %v701, 7
        %v703 = vsub.s32 1, %v702
        %v704 = vrot.slane %v695, %v703
        %v705 = vlaneseq
        %v706 = vshrl.u32 %v705, 7
        %v707 = vsub.s32 1, %v706
        %v708 = vrot.slane %v696, %v707
        %vm709 = vcmp.eq.s32.totalorder %v700, 1
        %vm710 = vcmp.eq.s32.totalorder %v704, 1
        %vm711 = vcmp.eq.s32.totalorder %v708, 1
        %v712 = vsel %vm709, %v688, 0.0
        %v713 = vsel %vm710, %v689, 0.0
        %v714 = vsel %vm711, %v690, 0.0
        %v715 = vsel %vm709, %v691, 0.0
        %v716 = vsel %vm710, %v692, 0.0
        %v717 = vsel %vm711, %v693, 0.0
        %v718 = vadd.f32 %v627, %v712
        %v719 = vadd.f32 %v628, %v713
        %v720 = vadd.f32 %v629, %v714
        %v721 = vadd.f32 %v630, %v715
        %v722 = vadd.f32 %v631, %v716
        %v723 = vadd.f32 %v632, %v717
        %724 = vst [vmem:[%s212] sm:$0xff] %v718
        %725 = vst [vmem:[%s212 + $0x8] sm:$0xff] %v719
        %726 = vst [vmem:[%s212 + $0x10] sm:$0xff] %v720
        %727 = vst [vmem:[%s212 + $0x18] sm:$0xff] %v721
        %728 = vst [vmem:[%s212 + $0x20] sm:$0xff] %v722
        %729 = vst [vmem:[%s212 + $0x28] sm:$0xff] %v723
        %s730 = sand.u32 %s95, 1
        %s731 = scalar_lea.sflag [#allocation4], %s730
        %s732 = sand.u32 %s95, 1
        %s733 = smul.addr %s732, 48
        %s734 = scalar_lea.vmem [#allocation8], %s733
        // Predicated region
        $region45: #{tpu_custom_call.1} parent=31 // pred_check
          %p735 = pneg %p105
        $region46: #{tpu_custom_call.1} parent=31 // pred_check_branch
          %737 = sbr.rel (%p735) target = $region48
        $region47: #{tpu_custom_call.1} parent=31 // pred_region
          %s738 = smul.u32 2, %s19
          %s740 = ssub.s32 768, 768
          %741 = vsyncadd %s731, %s740
          %s742 = smul.addr %s738, 3
          %s743 = smul.addr %s742, 128
          %s744 = scalar_lea.hbm %s3, %s743
          %s745 = sshll.u32 %s734, 4
          %s746 = int_to_ptr.vmem [resolvable:$true] %s745
          %751 = dma.vmem_to_hbm [thread:$0]  %s746, 768, %s744, %s731, 384, 384, 24
        $region48: #{tpu_custom_call.1} parent=31 // pred_fallthru
          _
      $region32: #{tpu_custom_call.1} parent=5 // pred_fallthru
        _
      %p752 = scmp.le.s32.totalorder 2, %s14
      // Predicated region
      $region49: #{tpu_custom_call.1} parent=5 // pred_check
        %p753 = pneg %p752
      $region50: #{tpu_custom_call.1} parent=5 // pred_check_branch
        %755 = sbr.rel (%p753) target = $region52
      $region51: #{tpu_custom_call.1} parent=5 // pred_region
        %s756 = ssub.s32 %s14, 2
        // Predicated region
        $region53: #{tpu_custom_call.1} parent=51 // pred_check
          %p757 = pneg %p111
        $region54: #{tpu_custom_call.1} parent=51 // pred_check_branch
          %759 = sbr.rel (%p757) target = $region56
        $region55: #{tpu_custom_call.1} parent=51 // pred_region
          %s760 = sand.u32 %s96, 1
          %s761 = scalar_lea.sflag [#allocation4], %s760
          %s762 = sand.u32 %s96, 1
          %s763 = smul.addr %s762, 48
          %s764 = scalar_lea.vmem [#allocation8], %s763
          %765 = dma.done %s761, 768
        $region56: #{tpu_custom_call.1} parent=51 // pred_fallthru
          _
      $region52: #{tpu_custom_call.1} parent=5 // pred_fallthru
        _
    $region6: #{tpu_custom_call.1} parent=1 // loop_footer
      %s18 = sadd.s32 1, %s14
    $region7: #{tpu_custom_call.1} parent=1 // loop_footer_branch
      %13 = sbr.rel target = $region3
    $region8: #{tpu_custom_call.1} parent=1 // loop_exit
      _
    %766 = vsyncpa [#allocation3], 1
    %s767 = scalar_lea.sflag [#allocation3], 1
    %768 = vsyncpa %s767, 1
    %769 = vsyncpa [#allocation6], 1
    %770 = vsyncpa [#allocation4], 1
    %s771 = scalar_lea.sflag [#allocation4], 1
    %772 = vsyncpa %s771, 1

</llo_original>
